<compile_context>
chip_gen: v7x
topology: tpu7x:2x2x1
jax: 0.10.0
libtpu: 0.0.40
codegen_flags: <defaults>
</compile_context>

<pallas_src>
import jax
import jax.numpy as jnp
from jax.experimental import pallas as pl
from jax.experimental.pallas import tpu as pltpu


def _entorno_kernel(x_ref, y_ref, w1_ref, b1_ref, w2_ref, b2_ref, o_ref):
    # Cast MXU operands to bf16 in-kernel (no separate wrapper cast pass);
    # if they already arrive as bf16 the cast is a no-op.
    x_bf16 = x_ref[...].astype(jnp.bfloat16)
    # Layer 1: bf16 MXU inputs, f32 accumulation; bias + ReLU in f32.
    h = jnp.dot(x_bf16, w1_ref[...].astype(jnp.bfloat16),
                preferred_element_type=jnp.float32)
    h = jnp.maximum(h + b1_ref[...].astype(jnp.float32), 0.0)
    # Layer 2: cast activations to bf16 for the MXU, accumulate in f32.
    pred = jnp.dot(h.astype(jnp.bfloat16), w2_ref[...].astype(jnp.bfloat16),
                   preferred_element_type=jnp.float32)
    pred = pred + b2_ref[...].astype(jnp.float32)
    # Evaluation against target y (residual / error signal), f32 epilogue.
    o_ref[...] = (pred - y_ref[...].astype(jnp.float32)).astype(o_ref.dtype)


def _pick_tile_b(B):
    """Largest divisor of B that is a multiple of 8 and <= min(1024, B // 2).

    Capping at B // 2 keeps >= 2 grid steps on the 'parallel' batch axis so
    both v7x TensorCores get work; multiples of 8 satisfy the sublane tiling
    constraint.  Falls back to a single full-B block when no such divisor
    exists (full-extent block is always legal).
    """
    cap = 1024
    if B >= 16:
        cap = min(cap, B // 2)
    best = None
    d = 8
    while d <= cap:
        if B % d == 0:
            best = d
        d += 8
    return best if best is not None else B


def sistema_de_evaluacion(x, y, w1, b1, w2, b2, *, tile_b=None,
                          out_dtype=jnp.float32):
    """Pallas wrapper.

    x: (B, H) input, y: (B, O) target, w1: (H, H), b1: (1, H),
    w2: (H, O), b2: (1, O).  All arrays are DMA'd in their native dtype and
    cast in-kernel (hand in bf16 x / weights to cut HBM traffic further).
    B must be a multiple of tile_b (auto-picked if None); H and O should be
    multiples of 128 for lane-dense, unmasked stores.
    """
    B, H = x.shape
    O = w2.shape[1]
    if tile_b is None:
        tile_b = _pick_tile_b(B)
    assert B % tile_b == 0, "pad the batch to a multiple of tile_b"

    grid = (B // tile_b,)

    # VMEM budget: double-buffered x/y/out blocks + single-buffered params.
    out_isize = jnp.dtype(out_dtype).itemsize
    block_bytes = (
        2 * tile_b * H * x.dtype.itemsize        # x blocks (double-buffered)
        + 2 * tile_b * O * y.dtype.itemsize      # y blocks (double-buffered)
        + 2 * tile_b * O * out_isize             # out blocks (double-buffered)
        + H * H * w1.dtype.itemsize              # resident W1
        + H * O * w2.dtype.itemsize              # resident W2
        + H * b1.dtype.itemsize + O * b2.dtype.itemsize)
    # Headroom for compute temporaries; cap at 64 MiB (v7x physical VMEM).
    vmem_limit = min(max(2 * block_bytes, 32 << 20), 64 << 20)

    cost = pl.CostEstimate(
        flops=2 * B * H * H + 2 * B * H * O,
        transcendentals=0,
        bytes_accessed=(B * H * x.dtype.itemsize
                        + B * O * y.dtype.itemsize
                        + B * O * out_isize
                        + H * H * w1.dtype.itemsize
                        + H * O * w2.dtype.itemsize
                        + H * b1.dtype.itemsize + O * b2.dtype.itemsize))

    return pl.pallas_call(
        _entorno_kernel,
        out_shape=jax.ShapeDtypeStruct((B, O), out_dtype),
        grid_spec=pltpu.PrefetchScalarGridSpec(
            num_scalar_prefetch=0,
            grid=grid,
            in_specs=[
                # Batch-tiled activations / targets (double-buffered by default).
                pl.BlockSpec((tile_b, H), lambda i: (i, 0)),
                pl.BlockSpec((tile_b, O), lambda i: (i, 0)),
                # Weights / biases: constant index_map + single buffer ->
                # VMEM-resident, no wasted second buffer.
                pl.BlockSpec((H, H), lambda i: (0, 0),
                             pipeline_mode=pl.Buffered(1)),
                pl.BlockSpec((1, H), lambda i: (0, 0),
                             pipeline_mode=pl.Buffered(1)),
                pl.BlockSpec((H, O), lambda i: (0, 0),
                             pipeline_mode=pl.Buffered(1)),
                pl.BlockSpec((1, O), lambda i: (0, 0),
                             pipeline_mode=pl.Buffered(1)),
            ],
            out_specs=pl.BlockSpec((tile_b, O), lambda i: (i, 0)),
        ),
        compiler_params=pltpu.CompilerParams(
            dimension_semantics=("parallel",),
            vmem_limit_bytes=vmem_limit,
        ),
        cost_estimate=cost,
    )(x, y, w1, b1, w2, b2)


if __name__ == "__main__":
    # Lane-dense shapes (multiples of 128 on the feature axes), small batch.
    B, H, O = 256, 128, 128

    key = jax.random.PRNGKey(0)
    kx, ky, k1, k2, k3, k4 = jax.random.split(key, 6)

    x = jax.random.normal(kx, (B, H), dtype=jnp.float32)
    y = jax.random.normal(ky, (B, O), dtype=jnp.float32)

    # Deterministic parameter init (synthetic, no checkpoint loading).
    # Weights are cast to bf16 ONCE at model setup (outside the per-call
    # path); biases stay f32.
    w1 = (jax.random.normal(k1, (H, H), dtype=jnp.float32) * 0.1
          ).astype(jnp.bfloat16)
    b1 = jax.random.normal(k2, (1, H), dtype=jnp.float32) * 0.01
    w2 = (jax.random.normal(k3, (H, O), dtype=jnp.float32) * 0.1
          ).astype(jnp.bfloat16)
    b2 = jax.random.normal(k4, (1, O), dtype=jnp.float32) * 0.01

    # tile_b auto-picked -> 128 here (grid of 2 "parallel" steps).
    out = sistema_de_evaluacion(x, y, w1, b1, w2, b2)
    out = jax.block_until_ready(out)

    # Pure-JAX reference using the same bf16-matmul / f32-accumulate recipe.
    h_ref = jnp.maximum(
        jnp.dot(x.astype(jnp.bfloat16), w1,
                preferred_element_type=jnp.float32) + b1, 0.0)
    pred_ref = jnp.dot(h_ref.astype(jnp.bfloat16), w2,
                       preferred_element_type=jnp.float32) + b2
    ref = pred_ref - y

    assert out.shape == (B, O)
    assert jnp.allclose(out, ref, atol=2e-3, rtol=2e-3)

    # Sanity vs. full-f32 math (loose tolerance for bf16 quantization).
    ref_f32 = (jnp.maximum(x @ w1.astype(jnp.float32) + b1, 0.0)
               @ w2.astype(jnp.float32) + b2) - y
    assert jnp.allclose(out, ref_f32, atol=5e-2, rtol=5e-2)

    print("KERNEL_OK")
</pallas_src>

<mosaic_0001>
module attributes {stable_mosaic.version = 11 : i64} {
  func.func @_entorno_kernel(%arg0: i32, %arg1: memref<128x128xf32, #tpu.memory_space<vmem>>, %arg2: memref<128x128xf32, #tpu.memory_space<vmem>>, %arg3: memref<128x128xbf16, #tpu.memory_space<vmem>>, %arg4: memref<1x128xf32, #tpu.memory_space<vmem>>, %arg5: memref<128x128xbf16, #tpu.memory_space<vmem>>, %arg6: memref<1x128xf32, #tpu.memory_space<vmem>>, %arg7: memref<128x128xf32, #tpu.memory_space<vmem>>) attributes {dimension_semantics = [#tpu.dimension_semantics<parallel>], iteration_bounds = array<i64: 2>, scalar_prefetch = 0 : i64, scratch_operands = 0 : i64, tpu.core_type = #tpu.core_type<tc>, window_params = [{transform_indices = @transform_0, window_bounds = array<i64: 128, 128>}, {transform_indices = @transform_1, window_bounds = array<i64: 128, 128>}, {pipeline_mode = #tpu.pipeline_mode<synchronous>, transform_indices = @transform_2, window_bounds = array<i64: 128, 128>}, {pipeline_mode = #tpu.pipeline_mode<synchronous>, transform_indices = @transform_3, window_bounds = array<i64: 1, 128>}, {pipeline_mode = #tpu.pipeline_mode<synchronous>, transform_indices = @transform_4, window_bounds = array<i64: 128, 128>}, {pipeline_mode = #tpu.pipeline_mode<synchronous>, transform_indices = @transform_5, window_bounds = array<i64: 1, 128>}, {transform_indices = @transform_6, window_bounds = array<i64: 128, 128>}]} {
    %c0 = arith.constant 0 : index
    %c0_0 = arith.constant 0 : index
    %0 = vector.load %arg1[%c0, %c0_0] : memref<128x128xf32, #tpu.memory_space<vmem>>, vector<128x128xf32>
    %1 = arith.truncf %0 : vector<128x128xf32> to vector<128x128xbf16>
    %c0_1 = arith.constant 0 : index
    %c0_2 = arith.constant 0 : index
    %2 = vector.load %arg3[%c0_1, %c0_2] : memref<128x128xbf16, #tpu.memory_space<vmem>>, vector<128x128xbf16>
    %cst = arith.constant dense<0.000000e+00> : vector<128x128xf32>
    %3 = tpu.matmul %1, %2, %cst {dimension_numbers = #tpu.dot_dimension_numbers<[1], [0], [0], [1], [0, 0, 1, 1], [], []>} : vector<128x128xbf16>, vector<128x128xbf16>, vector<128x128xf32> -> vector<128x128xf32>
    %c0_3 = arith.constant 0 : index
    %c0_4 = arith.constant 0 : index
    %4 = vector.load %arg4[%c0_3, %c0_4] : memref<1x128xf32, #tpu.memory_space<vmem>>, vector<1x128xf32>
    %5 = vector.broadcast %4 : vector<1x128xf32> to vector<128x128xf32>
    %6 = arith.addf %3, %5 : vector<128x128xf32>
    %cst_5 = arith.constant 0.000000e+00 : f32
    %7 = vector.broadcast %cst_5 : f32 to vector<128x128xf32>
    %8 = arith.maximumf %6, %7 : vector<128x128xf32>
    %9 = arith.truncf %8 : vector<128x128xf32> to vector<128x128xbf16>
    %c0_6 = arith.constant 0 : index
    %c0_7 = arith.constant 0 : index
    %10 = vector.load %arg5[%c0_6, %c0_7] : memref<128x128xbf16, #tpu.memory_space<vmem>>, vector<128x128xbf16>
    %cst_8 = arith.constant dense<0.000000e+00> : vector<128x128xf32>
    %11 = tpu.matmul %9, %10, %cst_8 {dimension_numbers = #tpu.dot_dimension_numbers<[1], [0], [0], [1], [0, 0, 1, 1], [], []>} : vector<128x128xbf16>, vector<128x128xbf16>, vector<128x128xf32> -> vector<128x128xf32>
    %c0_9 = arith.constant 0 : index
    %c0_10 = arith.constant 0 : index
    %12 = vector.load %arg6[%c0_9, %c0_10] : memref<1x128xf32, #tpu.memory_space<vmem>>, vector<1x128xf32>
    %13 = vector.broadcast %12 : vector<1x128xf32> to vector<128x128xf32>
    %14 = arith.addf %11, %13 : vector<128x128xf32>
    %c0_11 = arith.constant 0 : index
    %c0_12 = arith.constant 0 : index
    %15 = vector.load %arg2[%c0_11, %c0_12] : memref<128x128xf32, #tpu.memory_space<vmem>>, vector<128x128xf32>
    %16 = arith.subf %14, %15 : vector<128x128xf32>
    %c0_13 = arith.constant 0 : index
    %c0_14 = arith.constant 0 : index
    %17 = vector.load %arg7[%c0_13, %c0_14] : memref<128x128xf32, #tpu.memory_space<vmem>>, vector<128x128xf32>
    tpu.vector_store %arg7[%c0_13, %c0_14], %16 {strides = array<i32>} : memref<128x128xf32, #tpu.memory_space<vmem>>, vector<128x128xf32>,
    return
  }
  func.func @transform_0(%arg0: i32) -> (i32, i32) {
    %c0_i32 = arith.constant 0 : i32
    %c0_i32_0 = arith.constant 0 : i32
    return %arg0, %c0_i32 : i32, i32
  }
  func.func @transform_1(%arg0: i32) -> (i32, i32) {
    %c0_i32 = arith.constant 0 : i32
    %c0_i32_0 = arith.constant 0 : i32
    return %arg0, %c0_i32 : i32, i32
  }
  func.func @transform_2(%arg0: i32) -> (i32, i32) {
    %c0_i32 = arith.constant 0 : i32
    %c0_i32_0 = arith.constant 0 : i32
    %c0_i32_1 = arith.constant 0 : i32
    return %c0_i32, %c0_i32_0 : i32, i32
  }
  func.func @transform_3(%arg0: i32) -> (i32, i32) {
    %c0_i32 = arith.constant 0 : i32
    %c0_i32_0 = arith.constant 0 : i32
    %c0_i32_1 = arith.constant 0 : i32
    return %c0_i32, %c0_i32_0 : i32, i32
  }
  func.func @transform_4(%arg0: i32) -> (i32, i32) {
    %c0_i32 = arith.constant 0 : i32
    %c0_i32_0 = arith.constant 0 : i32
    %c0_i32_1 = arith.constant 0 : i32
    return %c0_i32, %c0_i32_0 : i32, i32
  }
  func.func @transform_5(%arg0: i32) -> (i32, i32) {
    %c0_i32 = arith.constant 0 : i32
    %c0_i32_0 = arith.constant 0 : i32
    %c0_i32_1 = arith.constant 0 : i32
    return %c0_i32, %c0_i32_0 : i32, i32
  }
  func.func @transform_6(%arg0: i32) -> (i32, i32) {
    %c0_i32 = arith.constant 0 : i32
    %c0_i32_0 = arith.constant 0 : i32
    return %arg0, %c0_i32 : i32, i32
  }
}

</mosaic_0001>

<llo_original>
// kernel: tpu_custom_call.1
$region0: #{tpu_custom_call.1}
  #allocation0 [shape = 'u32[]', space=smem, size = 0x4, offset = 0x4, fixed_abs, tag = 'smem constant byte address 0x4 - core index']
  #allocation1 [shape = 'u32[144,128]{1,0:T(1,128)}', space=vmem, size = 0x12000, scoped, tag = 'internal scratch']
  %s0 = inlined_call_operand.hbm [shape: f32[256,128], index: 0, kind: input, shape index: {}]
  %s1 = inlined_call_operand.hbm [shape: f32[256,128], index: 1, kind: input, shape index: {}]
  %s2 = inlined_call_operand.hbm [shape: bf16[128,128], index: 2, kind: input, shape index: {}]
  %s3 = inlined_call_operand.vmem [shape: f32[1,128], index: 3, kind: input, shape index: {}]
  %s4 = inlined_call_operand.hbm [shape: bf16[128,128], index: 4, kind: input, shape index: {}]
  %s5 = inlined_call_operand.vmem [shape: f32[1,128], index: 5, kind: input, shape index: {}]
  %s6 = inlined_call_operand.hbm [shape: f32[256,128], index: 6, kind: output, shape index: {}]
  %s7 = sld [smem:[#allocation0]]
  $region73: #{tpu_custom_call.1} parent=0
    _
  %s9 = ssub.s32 1, %s7
  %s10 = scalar_select 0, %s9, %s7
  $region1: #{tpu_custom_call.1} parent=0
    #allocation2 [shape = 'u8[131072]{0}', space=vmem, size = 0x20000, scoped, tag = 'input window, operand 0']
    #allocation3 [shape = 's32[2]{0}', space=sflag, size = 0x8, scoped, tag = 'scoped memory for tpu_custom_call.1']
    #allocation4 [shape = 's32[2]{0}', space=sflag, size = 0x8, scoped, tag = 'scoped memory for tpu_custom_call.1']
    #allocation5 [shape = 'u8[131072]{0}', space=vmem, size = 0x20000, scoped, tag = 'input window, operand 1']
    #allocation6 [shape = 's32[2]{0}', space=sflag, size = 0x8, scoped, tag = 'scoped memory for tpu_custom_call.1']
    #allocation7 [shape = 'u8[32768]{0}', space=vmem, size = 0x8000, scoped, tag = 'input window, operand 2, single buffered']
    #allocation8 [shape = 'u8[32768]{0}', space=vmem, size = 0x8000, scoped, tag = 'input window, operand 4, single buffered']
    #allocation9 [shape = 's32[1]{0}', space=sflag, size = 0x4, scoped, tag = 'scoped memory for tpu_custom_call.1']
    #allocation10 [shape = 'u8[131072]{0}', space=vmem, size = 0x20000, scoped, tag = 'output window, operand 0']
    %11 = vsyncpa [#allocation3], 0
    %s12 = scalar_lea.sflag [#allocation3], 1
    %13 = vsyncpa %s12, 0
    %14 = vsyncpa [#allocation6], 0
    %s15 = scalar_lea.sflag [#allocation6], 1
    %16 = vsyncpa %s15, 0
    %17 = vsyncpa [#allocation9], 0
    %18 = vsyncpa [#allocation4], 0
    %s19 = scalar_lea.sflag [#allocation4], 1
    %20 = vsyncpa %s19, 0
    loop: start=0, step=1, limit=4
    $region2: #{tpu_custom_call.1} parent=1 // loop_pre_header
      _
    $region3: #{tpu_custom_call.1} parent=1 // loop_header
      %s22 = sphi 0, %s26
      %p23 = scmp.ge.s32.totalorder %s22, 4
      %s32 = sphi 0, %s34
      %s35 = sphi 0, %s32
      %s36 = sphi 0, %s35
      %s52 = sphi 0, %s36
      %s58 = sphi 0, %s60
      %s61 = sphi 0, %s58
      %s62 = sphi 0, %s61
      %s78 = sphi 0, %s62
      %s82 = sphi 0, %s82
      %s84 = sphi 0, %s82
      %s85 = sphi 0, %s84
      %s99 = sphi 0, %s85
      %s103 = sphi 0, %s103
      %s105 = sphi 0, %s103
      %s106 = sphi 0, %s105
      %s120 = sphi 0, %s106
      %s124 = sphi 0, %s124
      %s126 = sphi 0, %s124
      %s127 = sphi 0, %s126
      %s141 = sphi 0, %s127
      %s145 = sphi 0, %s145
      %s147 = sphi 0, %s145
      %s148 = sphi 0, %s147
      %s162 = sphi 0, %s148
      %s168 = sphi 0, %s170
      %s171 = sphi 0, %s168
      %s172 = sphi 0, %s171
      %s188 = sphi 0, %s172
    $region4: #{tpu_custom_call.1} parent=1 // loop_header_branch
      %25 = sbr.rel (%p23) target = $region8
    $region5: #{tpu_custom_call.1} parent=1 // loop_body
      %s27 = ssub.s32 %s22, 1
      %s28 = ssub.s32 %s22, 2
      %s29 = sadd.s32 %s22, 1
      %s30 = ssub.s32 %s22, %s29
      %p31 = scmp.eq.s32.totalorder %s30, 0
      %s33 = sadd.s32 %s32, 1
      %s34 = scalar_select %p31, %s32, %s33
      %p37 = pneg %p31
      %p38 = scmp.eq.s32.totalorder %s22, 1
      %p39 = por %p37, %p38
      %p40 = scmp.ne.s32.totalorder %s32, %s35
      %p41 = scmp.eq.s32.totalorder %s22, 0
      %p42 = por %p40, %p41
      %p43 = scmp.ne.s32.totalorder %s32, %s35
      %p44 = scmp.eq.s32.totalorder %s27, 1
      %p45 = por %p43, %p44
      %p46 = scmp.ne.s32.totalorder %s35, %s36
      %p47 = scmp.eq.s32.totalorder %s27, 0
      %p48 = por %p46, %p47
      %p49 = scmp.ne.s32.totalorder %s35, %s36
      %p50 = scmp.eq.s32.totalorder %s28, 1
      %p51 = por %p49, %p50
      %p53 = scmp.ne.s32.totalorder %s36, %s52
      %p54 = scmp.eq.s32.totalorder %s28, 0
      %p55 = por %p53, %p54
      %s56 = ssub.s32 %s22, %s29
      %p57 = scmp.eq.s32.totalorder %s56, 0
      %s59 = sadd.s32 %s58, 1
      %s60 = scalar_select %p57, %s58, %s59
      %p63 = pneg %p57
      %p64 = scmp.eq.s32.totalorder %s22, 1
      %p65 = por %p63, %p64
      %p66 = scmp.ne.s32.totalorder %s58, %s61
      %p67 = scmp.eq.s32.totalorder %s22, 0
      %p68 = por %p66, %p67
      %p69 = scmp.ne.s32.totalorder %s58, %s61
      %p70 = scmp.eq.s32.totalorder %s27, 1
      %p71 = por %p69, %p70
      %p72 = scmp.ne.s32.totalorder %s61, %s62
      %p73 = scmp.eq.s32.totalorder %s27, 0
      %p74 = por %p72, %p73
      %p75 = scmp.ne.s32.totalorder %s61, %s62
      %p76 = scmp.eq.s32.totalorder %s28, 1
      %p77 = por %p75, %p76
      %p79 = scmp.ne.s32.totalorder %s62, %s78
      %p80 = scmp.eq.s32.totalorder %s28, 0
      %p81 = por %p79, %p80
      %s83 = sadd.s32 %s82, 1
      %p86 = scmp.eq.s32.totalorder %s22, 1
      %p87 = scmp.ne.s32.totalorder %s82, %s84
      %p88 = scmp.eq.s32.totalorder %s22, 0
      %p89 = por %p87, %p88
      %p90 = scmp.ne.s32.totalorder %s82, %s84
      %p91 = scmp.eq.s32.totalorder %s27, 1
      %p92 = por %p90, %p91
      %p93 = scmp.ne.s32.totalorder %s84, %s85
      %p94 = scmp.eq.s32.totalorder %s27, 0
      %p95 = por %p93, %p94
      %p96 = scmp.ne.s32.totalorder %s84, %s85
      %p97 = scmp.eq.s32.totalorder %s28, 1
      %p98 = por %p96, %p97
      %p100 = scmp.ne.s32.totalorder %s85, %s99
      %p101 = scmp.eq.s32.totalorder %s28, 0
      %p102 = por %p100, %p101
      %s104 = sadd.s32 %s103, 1
      %p107 = scmp.eq.s32.totalorder %s22, 1
      %p108 = scmp.ne.s32.totalorder %s103, %s105
      %p109 = scmp.eq.s32.totalorder %s22, 0
      %p110 = por %p108, %p109
      %p111 = scmp.ne.s32.totalorder %s103, %s105
      %p112 = scmp.eq.s32.totalorder %s27, 1
      %p113 = por %p111, %p112
      %p114 = scmp.ne.s32.totalorder %s105, %s106
      %p115 = scmp.eq.s32.totalorder %s27, 0
      %p116 = por %p114, %p115
      %p117 = scmp.ne.s32.totalorder %s105, %s106
      %p118 = scmp.eq.s32.totalorder %s28, 1
      %p119 = por %p117, %p118
      %p121 = scmp.ne.s32.totalorder %s106, %s120
      %p122 = scmp.eq.s32.totalorder %s28, 0
      %p123 = por %p121, %p122
      %s125 = sadd.s32 %s124, 1
      %p128 = scmp.eq.s32.totalorder %s22, 1
      %p129 = scmp.ne.s32.totalorder %s124, %s126
      %p130 = scmp.eq.s32.totalorder %s22, 0
      %p131 = por %p129, %p130
      %p132 = scmp.ne.s32.totalorder %s124, %s126
      %p133 = scmp.eq.s32.totalorder %s27, 1
      %p134 = por %p132, %p133
      %p135 = scmp.ne.s32.totalorder %s126, %s127
      %p136 = scmp.eq.s32.totalorder %s27, 0
      %p137 = por %p135, %p136
      %p138 = scmp.ne.s32.totalorder %s126, %s127
      %p139 = scmp.eq.s32.totalorder %s28, 1
      %p140 = por %p138, %p139
      %p142 = scmp.ne.s32.totalorder %s127, %s141
      %p143 = scmp.eq.s32.totalorder %s28, 0
      %p144 = por %p142, %p143
      %s146 = sadd.s32 %s145, 1
      %p149 = scmp.eq.s32.totalorder %s22, 1
      %p150 = scmp.ne.s32.totalorder %s145, %s147
      %p151 = scmp.eq.s32.totalorder %s22, 0
      %p152 = por %p150, %p151
      %p153 = scmp.ne.s32.totalorder %s145, %s147
      %p154 = scmp.eq.s32.totalorder %s27, 1
      %p155 = por %p153, %p154
      %p156 = scmp.ne.s32.totalorder %s147, %s148
      %p157 = scmp.eq.s32.totalorder %s27, 0
      %p158 = por %p156, %p157
      %p159 = scmp.ne.s32.totalorder %s147, %s148
      %p160 = scmp.eq.s32.totalorder %s28, 1
      %p161 = por %p159, %p160
      %p163 = scmp.ne.s32.totalorder %s148, %s162
      %p164 = scmp.eq.s32.totalorder %s28, 0
      %p165 = por %p163, %p164
      %s166 = ssub.s32 %s22, %s29
      %p167 = scmp.eq.s32.totalorder %s166, 0
      %s169 = sadd.s32 %s168, 1
      %s170 = scalar_select %p167, %s168, %s169
      %p173 = pneg %p167
      %p174 = scmp.eq.s32.totalorder %s22, 1
      %p175 = por %p173, %p174
      %p176 = scmp.ne.s32.totalorder %s168, %s171
      %p177 = scmp.eq.s32.totalorder %s22, 0
      %p178 = por %p176, %p177
      %p179 = scmp.ne.s32.totalorder %s168, %s171
      %p180 = scmp.eq.s32.totalorder %s27, 1
      %p181 = por %p179, %p180
      %p182 = scmp.ne.s32.totalorder %s171, %s172
      %p183 = scmp.eq.s32.totalorder %s27, 0
      %p184 = por %p182, %p183
      %p185 = scmp.ne.s32.totalorder %s171, %s172
      %p186 = scmp.eq.s32.totalorder %s28, 1
      %p187 = por %p185, %p186
      %p189 = scmp.ne.s32.totalorder %s172, %s188
      %p190 = scmp.eq.s32.totalorder %s28, 0
      %p191 = por %p189, %p190
      %p192 = scmp.le.s32.totalorder 1, %s22
      %p193 = scmp.lt.s32.totalorder %s22, 3
      %p194 = pnand %p192, %p193
      %p195 = pneg %p194
      // Predicated region
      $region9: #{tpu_custom_call.1} parent=5 // pred_check
        _
      $region10: #{tpu_custom_call.1} parent=5 // pred_check_branch
        %197 = sbr.rel (%p194) target = $region12
      $region11: #{tpu_custom_call.1} parent=5 // pred_region
        %s198 = ssub.s32 %s22, 1
        // Predicated region
        $region13: #{tpu_custom_call.1} parent=11 // pred_check
          %p199 = pneg %p95
        $region14: #{tpu_custom_call.1} parent=11 // pred_check_branch
          %201 = sbr.rel (%p199) target = $region16
        $region15: #{tpu_custom_call.1} parent=11 // pred_region
          %s203 = ssub.s32 1024, 1024
          %204 = vsyncadd [#allocation6], %s203
          %s205 = sshll.u32 [#allocation7], 4
          %s206 = int_to_ptr.vmem [resolvable:$true] %s205
          %211 = dma.hbm_to_vmem [thread:$0]  %s2, 1024, %s206, [#allocation6], 64, 64, 4
        $region16: #{tpu_custom_call.1} parent=11 // pred_fallthru
          _
        // Predicated region
        $region17: #{tpu_custom_call.1} parent=11 // pred_check
          %p212 = pneg %p116
        $region18: #{tpu_custom_call.1} parent=11 // pred_check_branch
          %214 = sbr.rel (%p212) target = $region20
        $region19: #{tpu_custom_call.1} parent=11 // pred_region
          _
        $region20: #{tpu_custom_call.1} parent=11 // pred_fallthru
          _
        // Predicated region
        $region21: #{tpu_custom_call.1} parent=11 // pred_check
          %p215 = pneg %p137
        $region22: #{tpu_custom_call.1} parent=11 // pred_check_branch
          %217 = sbr.rel (%p215) target = $region24
        $region23: #{tpu_custom_call.1} parent=11 // pred_region
          %s219 = ssub.s32 1024, 1024
          %220 = vsyncadd [#allocation9], %s219
          %s221 = sshll.u32 [#allocation8], 4
          %s222 = int_to_ptr.vmem [resolvable:$true] %s221
          %227 = dma.hbm_to_vmem [thread:$0]  %s4, 1024, %s222, [#allocation9], 64, 64, 4
        $region24: #{tpu_custom_call.1} parent=11 // pred_fallthru
          _
        // Predicated region
        $region25: #{tpu_custom_call.1} parent=11 // pred_check
          %p228 = pneg %p158
        $region26: #{tpu_custom_call.1} parent=11 // pred_check_branch
          %230 = sbr.rel (%p228) target = $region28
        $region27: #{tpu_custom_call.1} parent=11 // pred_region
          _
        $region28: #{tpu_custom_call.1} parent=11 // pred_fallthru
          _
      $region12: #{tpu_custom_call.1} parent=5 // pred_fallthru
        _
      %p231 = scmp.lt.s32.totalorder %s22, 2
      // Predicated region
      $region29: #{tpu_custom_call.1} parent=5 // pred_check
        %p232 = pneg %p231
      $region30: #{tpu_custom_call.1} parent=5 // pred_check_branch
        %234 = sbr.rel (%p232) target = $region32
      $region31: #{tpu_custom_call.1} parent=5 // pred_region
        // Predicated region
        $region33: #{tpu_custom_call.1} parent=31 // pred_check
          %p235 = pneg %p42
        $region34: #{tpu_custom_call.1} parent=31 // pred_check_branch
          %237 = sbr.rel (%p235) target = $region36
        $region35: #{tpu_custom_call.1} parent=31 // pred_region
          %s238 = sand.u32 %s32, 1
          %s239 = scalar_lea.sflag [#allocation3], %s238
          %s240 = sand.u32 %s32, 1
          %s241 = smul.addr %s240, 128
          %s242 = scalar_lea.vmem [#allocation2], %s241
          %s243 = smul.u32 16, %s22
          %s245 = ssub.s32 2048, 2048
          %246 = vsyncadd %s239, %s245
          %s247 = smul.addr %s243, 128
          %s248 = scalar_lea.hbm %s0, %s247
          %s249 = sshll.u32 %s242, 4
          %s250 = int_to_ptr.vmem [resolvable:$true] %s249
          %255 = dma.hbm_to_vmem [thread:$0]  %s248, 2048, %s250, %s239, 128, 128, 8
        $region36: #{tpu_custom_call.1} parent=31 // pred_fallthru
          _
        // Predicated region
        $region37: #{tpu_custom_call.1} parent=31 // pred_check
          %p256 = pneg %p68
        $region38: #{tpu_custom_call.1} parent=31 // pred_check_branch
          %258 = sbr.rel (%p256) target = $region40
        $region39: #{tpu_custom_call.1} parent=31 // pred_region
          %s259 = sand.u32 %s22, 1
          %s260 = scalar_lea.sflag [#allocation6], %s259
          %s261 = sand.u32 %s58, 1
          %s262 = smul.addr %s261, 128
          %s263 = scalar_lea.vmem [#allocation5], %s262
          %s264 = smul.u32 16, %s22
          %s266 = ssub.s32 2048, 2048
          %267 = vsyncadd %s260, %s266
          %s268 = smul.addr %s264, 128
          %s269 = scalar_lea.hbm %s1, %s268
          %s270 = sshll.u32 %s263, 4
          %s271 = int_to_ptr.vmem [resolvable:$true] %s270
          %276 = dma.hbm_to_vmem [thread:$0]  %s269, 2048, %s271, %s260, 128, 128, 8
        $region40: #{tpu_custom_call.1} parent=31 // pred_fallthru
          _
      $region32: #{tpu_custom_call.1} parent=5 // pred_fallthru
        _
      %p277 = scmp.le.s32.totalorder 1, %s22
      %p278 = scmp.lt.s32.totalorder %s22, 3
      %p279 = pnand %p277, %p278
      %p280 = pneg %p279
      // Predicated region
      $region41: #{tpu_custom_call.1} parent=5 // pred_check
        _
      $region42: #{tpu_custom_call.1} parent=5 // pred_check_branch
        %282 = sbr.rel (%p279) target = $region44
      $region43: #{tpu_custom_call.1} parent=5 // pred_region
        %s283 = ssub.s32 %s22, 1
        %s284 = sand.u32 %s35, 1
        %s285 = scalar_lea.sflag [#allocation3], %s284
        %s286 = sand.u32 %s35, 1
        %s287 = smul.addr %s286, 128
        %s288 = scalar_lea.vmem [#allocation2], %s287
        // Predicated region
        $region45: #{tpu_custom_call.1} parent=43 // pred_check
          %p289 = pneg %p48
        $region46: #{tpu_custom_call.1} parent=43 // pred_check_branch
          %291 = sbr.rel (%p289) target = $region48
        $region47: #{tpu_custom_call.1} parent=43 // pred_region
          %292 = dma.done %s285, 2048
        $region48: #{tpu_custom_call.1} parent=43 // pred_fallthru
          _
        %s293 = sand.u32 %s27, 1
        %s294 = scalar_lea.sflag [#allocation6], %s293
        %s295 = sand.u32 %s61, 1
        %s296 = smul.addr %s295, 128
        %s297 = scalar_lea.vmem [#allocation5], %s296
        // Predicated region
        $region49: #{tpu_custom_call.1} parent=43 // pred_check
          %p298 = pneg %p74
        $region50: #{tpu_custom_call.1} parent=43 // pred_check_branch
          %300 = sbr.rel (%p298) target = $region52
        $region51: #{tpu_custom_call.1} parent=43 // pred_region
          %301 = dma.done %s294, 2048
        $region52: #{tpu_custom_call.1} parent=43 // pred_fallthru
          _
        // Predicated region
        $region53: #{tpu_custom_call.1} parent=43 // pred_check
          %p302 = pneg %p95
        $region54: #{tpu_custom_call.1} parent=43 // pred_check_branch
          %304 = sbr.rel (%p302) target = $region56
        $region55: #{tpu_custom_call.1} parent=43 // pred_region
          %305 = dma.done [#allocation6], 1024
        $region56: #{tpu_custom_call.1} parent=43 // pred_fallthru
          _
        // Predicated region
        $region57: #{tpu_custom_call.1} parent=43 // pred_check
          %p306 = pneg %p137
        $region58: #{tpu_custom_call.1} parent=43 // pred_check_branch
          %308 = sbr.rel (%p306) target = $region60
        $region59: #{tpu_custom_call.1} parent=43 // pred_region
          %309 = dma.done [#allocation9], 1024
        $region60: #{tpu_custom_call.1} parent=43 // pred_fallthru
          _
        %s310 = sand.u32 %s35, 1
        %s311 = scalar_lea.sflag [#allocation3], %s310
        %s312 = sand.u32 %s35, 1
        %s313 = smul.addr %s312, 128
        %s314 = scalar_lea.vmem [#allocation2], %s313
        %p315 = pneg %p48
        %p316 = pneg %p45
        %s317 = sand.u32 %s27, 1
        %s318 = scalar_lea.sflag [#allocation6], %s317
        %s319 = sand.u32 %s61, 1
        %s320 = smul.addr %s319, 128
        %s321 = scalar_lea.vmem [#allocation5], %s320
        %p322 = pneg %p74
        %p323 = pneg %p71
        %p324 = pneg %p95
        %p325 = pneg %p92
        %p326 = pneg %p116
        %p327 = pneg %p113
        %p328 = pneg %p137
        %p329 = pneg %p134
        %p330 = pneg %p158
        %p331 = pneg %p155
        %p332 = pneg %p184
        %p333 = pneg %p181
        %s334 = sand.u32 %s171, 1
        %s335 = scalar_lea.sflag [#allocation4], %s334
        %s336 = sand.u32 %s171, 1
        %s337 = smul.addr %s336, 128
        %s338 = scalar_lea.vmem [#allocation10], %s337
        %s339 = smul.u32 16, %s27
        %s340 = smul.u32 16, %s27
        %s341 = smul.u32 16, %s27
        %v343 = vld [vmem:[%s288] sm:$0xff]
        %v344 = vld [vmem:[%s288 + $0x8] sm:$0xff]
        %v345 = vld [vmem:[%s288 + $0x10] sm:$0xff]
        %v346 = vld [vmem:[%s288 + $0x18] sm:$0xff]
        %v347 = vld [vmem:[%s288 + $0x20] sm:$0xff]
        %v348 = vld [vmem:[%s288 + $0x28] sm:$0xff]
        %v349 = vld [vmem:[%s288 + $0x30] sm:$0xff]
        %v350 = vld [vmem:[%s288 + $0x38] sm:$0xff]
        %v351 = vld [vmem:[%s288 + $0x40] sm:$0xff]
        %v352 = vld [vmem:[%s288 + $0x48] sm:$0xff]
        %v353 = vld [vmem:[%s288 + $0x50] sm:$0xff]
        %v354 = vld [vmem:[%s288 + $0x58] sm:$0xff]
        %v355 = vld [vmem:[%s288 + $0x60] sm:$0xff]
        %v356 = vld [vmem:[%s288 + $0x68] sm:$0xff]
        %v357 = vld [vmem:[%s288 + $0x70] sm:$0xff]
        %v358 = vld [vmem:[%s288 + $0x78] sm:$0xff]
        %v359 = vpack.c.bf16 %v344, %v343
        %v360 = vpack.c.bf16 %v346, %v345
        %v361 = vpack.c.bf16 %v348, %v347
        %v362 = vpack.c.bf16 %v350, %v349
        %v363 = vpack.c.bf16 %v352, %v351
        %v364 = vpack.c.bf16 %v354, %v353
        %v365 = vpack.c.bf16 %v356, %v355
        %v366 = vpack.c.bf16 %v358, %v357
        %v367 = vld [vmem:[#allocation7] sm:$0xf]
        %v368 = vld [vmem:[#allocation7 + $0x4] sm:$0xf]
        %v369 = vld [vmem:[#allocation7 + $0x8] sm:$0xf]
        %v370 = vld [vmem:[#allocation7 + $0xc] sm:$0xf]
        %v371 = vld [vmem:[#allocation7 + $0x10] sm:$0xf]
        %v372 = vld [vmem:[#allocation7 + $0x14] sm:$0xf]
        %v373 = vld [vmem:[#allocation7 + $0x18] sm:$0xf]
        %v374 = vld [vmem:[#allocation7 + $0x1c] sm:$0xf]
        %v375 = vld [vmem:[#allocation7 + $0x20] sm:$0xf]
        %v376 = vld [vmem:[#allocation7 + $0x24] sm:$0xf]
        %v377 = vld [vmem:[#allocation7 + $0x28] sm:$0xf]
        %v378 = vld [vmem:[#allocation7 + $0x2c] sm:$0xf]
        %v379 = vld [vmem:[#allocation7 + $0x30] sm:$0xf]
        %v380 = vld [vmem:[#allocation7 + $0x34] sm:$0xf]
        %v381 = vld [vmem:[#allocation7 + $0x38] sm:$0xf]
        %v382 = vld [vmem:[#allocation7 + $0x3c] sm:$0xf]
        %v383 = vld [vmem:[%s3] sm:$0x1]
        %v385 = vlaneseq
        %v386 = vshrl.u32 %v385, 7
        %v387 = vsub.s32 0, %v386
        %v388 = vrot.slane %v383, %v387
        %v406 = vunpack.c.l.b16 %v367
        %v407 = vunpack.c.l.b16 %v368
        %v408 = vunpack.c.l.b16 %v369
        %v409 = vunpack.c.l.b16 %v370
        %v410 = vunpack.c.l.b16 %v371
        %v411 = vunpack.c.l.b16 %v372
        %v412 = vunpack.c.l.b16 %v373
        %v413 = vunpack.c.l.b16 %v374
        %v414 = vunpack.c.l.b16 %v375
        %v415 = vunpack.c.l.b16 %v376
        %v416 = vunpack.c.l.b16 %v377
        %v417 = vunpack.c.l.b16 %v378
        %v418 = vunpack.c.l.b16 %v379
        %v419 = vunpack.c.l.b16 %v380
        %v420 = vunpack.c.l.b16 %v381
        %v421 = vunpack.c.l.b16 %v382
        %v422 = vpack.c.b16 %v407, %v406
        %v423 = vpack.c.b16 %v409, %v408
        %v424 = vpack.c.b16 %v411, %v410
        %v425 = vpack.c.b16 %v413, %v412
        %v426 = vpack.c.b16 %v415, %v414
        %v427 = vpack.c.b16 %v417, %v416
        %v428 = vpack.c.b16 %v419, %v418
        %v429 = vpack.c.b16 %v421, %v420
        %438 = vmatprep.subr.bf16.mxu0 0
        %439 = vmatpush1.bf16.msra.mxu0 %v422
        %440 = vmatprep.subr.bf16.mxu0 0
        %441 = vmatpush1.bf16.msra.mxu0 %v423
        %442 = vmatprep.subr.bf16.mxu0 0
        %443 = vmatpush1.bf16.msra.mxu0 %v424
        %444 = vmatprep.subr.bf16.mxu0 0
        %445 = vmatpush1.bf16.msra.mxu0 %v425
        %446 = vmatprep.subr.bf16.mxu0 0
        %447 = vmatpush1.bf16.msra.mxu0 %v426
        %448 = vmatprep.subr.bf16.mxu0 0
        %449 = vmatpush1.bf16.msra.mxu0 %v427
        %450 = vmatprep.subr.bf16.mxu0 0
        %451 = vmatpush1.bf16.msra.mxu0 %v428
        %452 = vmatprep.subr.bf16.mxu0 0
        %453 = vmatpush1.bf16.msra.mxu0 %v429
        %454 = vmatprep.subr.bf16.mxu0 0
        %455 = vmatpush1.bf16.msra.mxu0 0
        %456 = vmatprep.subr.bf16.mxu0 0
        %457 = vmatpush1.bf16.msra.mxu0 0
        %458 = vmatprep.subr.bf16.mxu0 0
        %459 = vmatpush1.bf16.msra.mxu0 0
        %460 = vmatprep.subr.bf16.mxu0 0
        %461 = vmatpush1.bf16.msra.mxu0 0
        %462 = vmatprep.subr.bf16.mxu0 0
        %463 = vmatpush1.bf16.msra.mxu0 0
        %464 = vmatprep.subr.bf16.mxu0 0
        %465 = vmatpush1.bf16.msra.mxu0 0
        %466 = vmatprep.subr.bf16.mxu0 0
        %467 = vmatpush1.bf16.msra.mxu0 0
        %468 = vmatprep.subr.bf16.mxu0 0
        %469 = vmatpush1.bf16.msra.mxu0 0
        %470 = vmatprep.mubr.bf16.mxu0 0
        %471 = vmatmul.mubr.bf16.gmra.mrb[0].mxu0 %v359
        %v472 = vpop.f32.mrb[0].mxu0
        %v473 = vadd.f32 %v388, %v472
        %v474 = vpop.f32.mrb[0].mxu0
        %v475 = vpop.f32.mrb[0].mxu0
        %v476 = vadd.f32 %v388, %v475
        %v477 = vpop.f32.mrb[0].mxu0
        %478 = vmatprep.mubr.bf16.mxu0 0
        %479 = vmatmul.mubr.bf16.gmra.mrb[0].mxu0 %v360
        %v480 = vpop.f32.mrb[0].mxu0
        %v481 = vadd.f32 %v388, %v480
        %v482 = vpop.f32.mrb[0].mxu0
        %v483 = vpop.f32.mrb[0].mxu0
        %v484 = vadd.f32 %v388, %v483
        %v485 = vpop.f32.mrb[0].mxu0
        %486 = vmatprep.mubr.bf16.mxu0 0
        %487 = vmatmul.mubr.bf16.gmra.mrb[0].mxu0 %v361
        %v488 = vpop.f32.mrb[0].mxu0
        %v489 = vadd.f32 %v388, %v488
        %v490 = vpop.f32.mrb[0].mxu0
        %v491 = vpop.f32.mrb[0].mxu0
        %v492 = vadd.f32 %v388, %v491
        %v493 = vpop.f32.mrb[0].mxu0
        %494 = vmatprep.mubr.bf16.mxu0 0
        %495 = vmatmul.mubr.bf16.gmra.mrb[0].mxu0 %v362
        %v496 = vpop.f32.mrb[0].mxu0
        %v497 = vadd.f32 %v388, %v496
        %v498 = vpop.f32.mrb[0].mxu0
        %v499 = vpop.f32.mrb[0].mxu0
        %v500 = vadd.f32 %v388, %v499
        %v501 = vpop.f32.mrb[0].mxu0
        %502 = vmatprep.mubr.bf16.mxu0 0
        %503 = vmatmul.mubr.bf16.gmra.mrb[0].mxu0 %v363
        %v504 = vpop.f32.mrb[0].mxu0
        %v505 = vadd.f32 %v388, %v504
        %v506 = vpop.f32.mrb[0].mxu0
        %v507 = vpop.f32.mrb[0].mxu0
        %v508 = vadd.f32 %v388, %v507
        %v509 = vpop.f32.mrb[0].mxu0
        %510 = vmatprep.mubr.bf16.mxu0 0
        %511 = vmatmul.mubr.bf16.gmra.mrb[0].mxu0 %v364
        %v512 = vpop.f32.mrb[0].mxu0
        %v513 = vadd.f32 %v388, %v512
        %v514 = vpop.f32.mrb[0].mxu0
        %v515 = vpop.f32.mrb[0].mxu0
        %v516 = vadd.f32 %v388, %v515
        %v517 = vpop.f32.mrb[0].mxu0
        %518 = vmatprep.mubr.bf16.mxu0 0
        %519 = vmatmul.mubr.bf16.gmra.mrb[0].mxu0 %v365
        %v520 = vpop.f32.mrb[0].mxu0
        %v521 = vadd.f32 %v388, %v520
        %v522 = vpop.f32.mrb[0].mxu0
        %v523 = vpop.f32.mrb[0].mxu0
        %v524 = vadd.f32 %v388, %v523
        %v525 = vpop.f32.mrb[0].mxu0
        %526 = vmatprep.mubr.bf16.mxu0 0
        %527 = vmatmul.mubr.bf16.gmra.mrb[0].mxu0 %v366
        %v528 = vpop.f32.mrb[0].mxu0
        %v529 = vadd.f32 %v388, %v528
        %v530 = vpop.f32.mrb[0].mxu0
        %v531 = vpop.f32.mrb[0].mxu0
        %v532 = vadd.f32 %v388, %v531
        %v533 = vpop.f32.mrb[0].mxu0
        %534 = vdwg.mxu0
        %v535 = vmax.f32 %v473, 0.0
        %v536 = vmax.f32 %v476, 0.0
        %v537 = vmax.f32 %v481, 0.0
        %v538 = vmax.f32 %v484, 0.0
        %v539 = vmax.f32 %v489, 0.0
        %v540 = vmax.f32 %v492, 0.0
        %v541 = vmax.f32 %v497, 0.0
        %v542 = vmax.f32 %v500, 0.0
        %v543 = vmax.f32 %v505, 0.0
        %v544 = vmax.f32 %v508, 0.0
        %v545 = vmax.f32 %v513, 0.0
        %v546 = vmax.f32 %v516, 0.0
        %v547 = vmax.f32 %v521, 0.0
        %v548 = vmax.f32 %v524, 0.0
        %v549 = vmax.f32 %v529, 0.0
        %v550 = vmax.f32 %v532, 0.0
        %v551 = vpack.c.bf16 %v536, %v535
        %v552 = vpack.c.bf16 %v538, %v537
        %v553 = vpack.c.bf16 %v540, %v539
        %v554 = vpack.c.bf16 %v542, %v541
        %v555 = vpack.c.bf16 %v544, %v543
        %v556 = vpack.c.bf16 %v546, %v545
        %v557 = vpack.c.bf16 %v548, %v547
        %v558 = vpack.c.bf16 %v550, %v549
        %v559 = vld [vmem:[#allocation8] sm:$0xf]
        %v560 = vld [vmem:[#allocation8 + $0x4] sm:$0xf]
        %v561 = vld [vmem:[#allocation8 + $0x8] sm:$0xf]
        %v562 = vld [vmem:[#allocation8 + $0xc] sm:$0xf]
        %v563 = vld [vmem:[#allocation8 + $0x10] sm:$0xf]
        %v564 = vld [vmem:[#allocation8 + $0x14] sm:$0xf]
        %v565 = vld [vmem:[#allocation8 + $0x18] sm:$0xf]
        %v566 = vld [vmem:[#allocation8 + $0x1c] sm:$0xf]
        %v567 = vld [vmem:[#allocation8 + $0x20] sm:$0xf]
        %v568 = vld [vmem:[#allocation8 + $0x24] sm:$0xf]
        %v569 = vld [vmem:[#allocation8 + $0x28] sm:$0xf]
        %v570 = vld [vmem:[#allocation8 + $0x2c] sm:$0xf]
        %v571 = vld [vmem:[#allocation8 + $0x30] sm:$0xf]
        %v572 = vld [vmem:[#allocation8 + $0x34] sm:$0xf]
        %v573 = vld [vmem:[#allocation8 + $0x38] sm:$0xf]
        %v574 = vld [vmem:[#allocation8 + $0x3c] sm:$0xf]
        %v575 = vld [vmem:[%s5] sm:$0x1]
        %v577 = vlaneseq
        %v578 = vshrl.u32 %v577, 7
        %v579 = vsub.s32 0, %v578
        %v580 = vrot.slane %v575, %v579
        %v598 = vunpack.c.l.b16 %v559
        %v599 = vunpack.c.l.b16 %v560
        %v600 = vunpack.c.l.b16 %v561
        %v601 = vunpack.c.l.b16 %v562
        %v602 = vunpack.c.l.b16 %v563
        %v603 = vunpack.c.l.b16 %v564
        %v604 = vunpack.c.l.b16 %v565
        %v605 = vunpack.c.l.b16 %v566
        %v606 = vunpack.c.l.b16 %v567
        %v607 = vunpack.c.l.b16 %v568
        %v608 = vunpack.c.l.b16 %v569
        %v609 = vunpack.c.l.b16 %v570
        %v610 = vunpack.c.l.b16 %v571
        %v611 = vunpack.c.l.b16 %v572
        %v612 = vunpack.c.l.b16 %v573
        %v613 = vunpack.c.l.b16 %v574
        %v614 = vpack.c.b16 %v599, %v598
        %v615 = vpack.c.b16 %v601, %v600
        %v616 = vpack.c.b16 %v603, %v602
        %v617 = vpack.c.b16 %v605, %v604
        %v618 = vpack.c.b16 %v607, %v606
        %v619 = vpack.c.b16 %v609, %v608
        %v620 = vpack.c.b16 %v611, %v610
        %v621 = vpack.c.b16 %v613, %v612
        %630 = vmatprep.subr.bf16.mxu0 0
        %631 = vmatpush1.bf16.msra.mxu0 %v614
        %632 = vmatprep.subr.bf16.mxu0 0
        %633 = vmatpush1.bf16.msra.mxu0 %v615
        %634 = vmatprep.subr.bf16.mxu0 0
        %635 = vmatpush1.bf16.msra.mxu0 %v616
        %636 = vmatprep.subr.bf16.mxu0 0
        %637 = vmatpush1.bf16.msra.mxu0 %v617
        %638 = vmatprep.subr.bf16.mxu0 0
        %639 = vmatpush1.bf16.msra.mxu0 %v618
        %640 = vmatprep.subr.bf16.mxu0 0
        %641 = vmatpush1.bf16.msra.mxu0 %v619
        %642 = vmatprep.subr.bf16.mxu0 0
        %643 = vmatpush1.bf16.msra.mxu0 %v620
        %644 = vmatprep.subr.bf16.mxu0 0
        %645 = vmatpush1.bf16.msra.mxu0 %v621
        %646 = vmatprep.subr.bf16.mxu0 0
        %647 = vmatpush1.bf16.msra.mxu0 0
        %648 = vmatprep.subr.bf16.mxu0 0
        %649 = vmatpush1.bf16.msra.mxu0 0
        %650 = vmatprep.subr.bf16.mxu0 0
        %651 = vmatpush1.bf16.msra.mxu0 0
        %652 = vmatprep.subr.bf16.mxu0 0
        %653 = vmatpush1.bf16.msra.mxu0 0
        %654 = vmatprep.subr.bf16.mxu0 0
        %655 = vmatpush1.bf16.msra.mxu0 0
        %656 = vmatprep.subr.bf16.mxu0 0
        %657 = vmatpush1.bf16.msra.mxu0 0
        %658 = vmatprep.subr.bf16.mxu0 0
        %659 = vmatpush1.bf16.msra.mxu0 0
        %660 = vmatprep.subr.bf16.mxu0 0
        %661 = vmatpush1.bf16.msra.mxu0 0
        %662 = vmatprep.mubr.bf16.mxu0 0
        %663 = vmatmul.mubr.bf16.gmra.mrb[0].mxu0 %v551
        %v664 = vpop.f32.mrb[0].mxu0
        %v665 = vadd.f32 %v580, %v664
        %v666 = vpop.f32.mrb[0].mxu0
        %v667 = vpop.f32.mrb[0].mxu0
        %v668 = vadd.f32 %v580, %v667
        %v669 = vpop.f32.mrb[0].mxu0
        %670 = vmatprep.mubr.bf16.mxu0 0
        %671 = vmatmul.mubr.bf16.gmra.mrb[0].mxu0 %v552
        %v672 = vpop.f32.mrb[0].mxu0
        %v673 = vadd.f32 %v580, %v672
        %v674 = vpop.f32.mrb[0].mxu0
        %v675 = vpop.f32.mrb[0].mxu0
        %v676 = vadd.f32 %v580, %v675
        %v677 = vpop.f32.mrb[0].mxu0
        %678 = vmatprep.mubr.bf16.mxu0 0
        %679 = vmatmul.mubr.bf16.gmra.mrb[0].mxu0 %v553
        %v680 = vpop.f32.mrb[0].mxu0
        %v681 = vadd.f32 %v580, %v680
        %v682 = vpop.f32.mrb[0].mxu0
        %v683 = vpop.f32.mrb[0].mxu0
        %v684 = vadd.f32 %v580, %v683
        %v685 = vpop.f32.mrb[0].mxu0
        %686 = vmatprep.mubr.bf16.mxu0 0
        %687 = vmatmul.mubr.bf16.gmra.mrb[0].mxu0 %v554
        %v688 = vpop.f32.mrb[0].mxu0
        %v689 = vadd.f32 %v580, %v688
        %v690 = vpop.f32.mrb[0].mxu0
        %v691 = vpop.f32.mrb[0].mxu0
        %v692 = vadd.f32 %v580, %v691
        %v693 = vpop.f32.mrb[0].mxu0
        %694 = vmatprep.mubr.bf16.mxu0 0
        %695 = vmatmul.mubr.bf16.gmra.mrb[0].mxu0 %v555
        %v696 = vpop.f32.mrb[0].mxu0
        %v697 = vadd.f32 %v580, %v696
        %v698 = vpop.f32.mrb[0].mxu0
        %v699 = vpop.f32.mrb[0].mxu0
        %v700 = vadd.f32 %v580, %v699
        %v701 = vpop.f32.mrb[0].mxu0
        %702 = vmatprep.mubr.bf16.mxu0 0
        %703 = vmatmul.mubr.bf16.gmra.mrb[0].mxu0 %v556
        %v704 = vpop.f32.mrb[0].mxu0
        %v705 = vadd.f32 %v580, %v704
        %v706 = vpop.f32.mrb[0].mxu0
        %v707 = vpop.f32.mrb[0].mxu0
        %v708 = vadd.f32 %v580, %v707
        %v709 = vpop.f32.mrb[0].mxu0
        %710 = vmatprep.mubr.bf16.mxu0 0
        %711 = vmatmul.mubr.bf16.gmra.mrb[0].mxu0 %v557
        %v712 = vpop.f32.mrb[0].mxu0
        %v713 = vadd.f32 %v580, %v712
        %v714 = vpop.f32.mrb[0].mxu0
        %v715 = vpop.f32.mrb[0].mxu0
        %v716 = vadd.f32 %v580, %v715
        %v717 = vpop.f32.mrb[0].mxu0
        %718 = vmatprep.mubr.bf16.mxu0 0
        %719 = vmatmul.mubr.bf16.gmra.mrb[0].mxu0 %v558
        %v720 = vpop.f32.mrb[0].mxu0
        %v721 = vadd.f32 %v580, %v720
        %v722 = vpop.f32.mrb[0].mxu0
        %v723 = vpop.f32.mrb[0].mxu0
        %v724 = vadd.f32 %v580, %v723
        %v725 = vpop.f32.mrb[0].mxu0
        %726 = vdwg.mxu0
        %v727 = vld [vmem:[%s297] sm:$0xff]
        %v728 = vld [vmem:[%s297 + $0x8] sm:$0xff]
        %v729 = vld [vmem:[%s297 + $0x10] sm:$0xff]
        %v730 = vld [vmem:[%s297 + $0x18] sm:$0xff]
        %v731 = vld [vmem:[%s297 + $0x20] sm:$0xff]
        %v732 = vld [vmem:[%s297 + $0x28] sm:$0xff]
        %v733 = vld [vmem:[%s297 + $0x30] sm:$0xff]
        %v734 = vld [vmem:[%s297 + $0x38] sm:$0xff]
        %v735 = vld [vmem:[%s297 + $0x40] sm:$0xff]
        %v736 = vld [vmem:[%s297 + $0x48] sm:$0xff]
        %v737 = vld [vmem:[%s297 + $0x50] sm:$0xff]
        %v738 = vld [vmem:[%s297 + $0x58] sm:$0xff]
        %v739 = vld [vmem:[%s297 + $0x60] sm:$0xff]
        %v740 = vld [vmem:[%s297 + $0x68] sm:$0xff]
        %v741 = vld [vmem:[%s297 + $0x70] sm:$0xff]
        %v742 = vld [vmem:[%s297 + $0x78] sm:$0xff]
        %v743 = vsub.f32 %v665, %v727
        %v744 = vsub.f32 %v668, %v728
        %v745 = vsub.f32 %v673, %v729
        %v746 = vsub.f32 %v676, %v730
        %v747 = vsub.f32 %v681, %v731
        %v748 = vsub.f32 %v684, %v732
        %v749 = vsub.f32 %v689, %v733
        %v750 = vsub.f32 %v692, %v734
        %v751 = vsub.f32 %v697, %v735
        %v752 = vsub.f32 %v700, %v736
        %v753 = vsub.f32 %v705, %v737
        %v754 = vsub.f32 %v708, %v738
        %v755 = vsub.f32 %v713, %v739
        %v756 = vsub.f32 %v716, %v740
        %v757 = vsub.f32 %v721, %v741
        %v758 = vsub.f32 %v724, %v742
        %759 = vst [vmem:[%s338] sm:$0xff] %v743
        %760 = vst [vmem:[%s338 + $0x8] sm:$0xff] %v744
        %761 = vst [vmem:[%s338 + $0x10] sm:$0xff] %v745
        %762 = vst [vmem:[%s338 + $0x18] sm:$0xff] %v746
        %763 = vst [vmem:[%s338 + $0x20] sm:$0xff] %v747
        %764 = vst [vmem:[%s338 + $0x28] sm:$0xff] %v748
        %765 = vst [vmem:[%s338 + $0x30] sm:$0xff] %v749
        %766 = vst [vmem:[%s338 + $0x38] sm:$0xff] %v750
        %767 = vst [vmem:[%s338 + $0x40] sm:$0xff] %v751
        %768 = vst [vmem:[%s338 + $0x48] sm:$0xff] %v752
        %769 = vst [vmem:[%s338 + $0x50] sm:$0xff] %v753
        %770 = vst [vmem:[%s338 + $0x58] sm:$0xff] %v754
        %771 = vst [vmem:[%s338 + $0x60] sm:$0xff] %v755
        %772 = vst [vmem:[%s338 + $0x68] sm:$0xff] %v756
        %773 = vst [vmem:[%s338 + $0x70] sm:$0xff] %v757
        %774 = vst [vmem:[%s338 + $0x78] sm:$0xff] %v758
        %s775 = sand.u32 %s171, 1
        %s776 = scalar_lea.sflag [#allocation4], %s775
        %s777 = sand.u32 %s171, 1
        %s778 = smul.addr %s777, 128
        %s779 = scalar_lea.vmem [#allocation10], %s778
        // Predicated region
        $region61: #{tpu_custom_call.1} parent=43 // pred_check
          %p780 = pneg %p181
        $region62: #{tpu_custom_call.1} parent=43 // pred_check_branch
          %782 = sbr.rel (%p780) target = $region64
        $region63: #{tpu_custom_call.1} parent=43 // pred_region
          %s783 = smul.u32 16, %s27
          %s785 = ssub.s32 2048, 2048
          %786 = vsyncadd %s776, %s785
          %s787 = smul.addr %s783, 128
          %s788 = scalar_lea.hbm %s6, %s787
          %s789 = sshll.u32 %s779, 4
          %s790 = int_to_ptr.vmem [resolvable:$true] %s789
          %795 = dma.vmem_to_hbm [thread:$0]  %s790, 2048, %s788, %s776, 128, 128, 8
        $region64: #{tpu_custom_call.1} parent=43 // pred_fallthru
          _
      $region44: #{tpu_custom_call.1} parent=5 // pred_fallthru
        _
      %p796 = scmp.le.s32.totalorder 2, %s22
      // Predicated region
      $region65: #{tpu_custom_call.1} parent=5 // pred_check
        %p797 = pneg %p796
      $region66: #{tpu_custom_call.1} parent=5 // pred_check_branch
        %799 = sbr.rel (%p797) target = $region68
      $region67: #{tpu_custom_call.1} parent=5 // pred_region
        %s800 = ssub.s32 %s22, 2
        // Predicated region
        $region69: #{tpu_custom_call.1} parent=67 // pred_check
          %p801 = pneg %p187
        $region70: #{tpu_custom_call.1} parent=67 // pred_check_branch
          %803 = sbr.rel (%p801) target = $region72
        $region71: #{tpu_custom_call.1} parent=67 // pred_region
          %s804 = sand.u32 %s172, 1
          %s805 = scalar_lea.sflag [#allocation4], %s804
          %s806 = sand.u32 %s172, 1
          %s807 = smul.addr %s806, 128
          %s808 = scalar_lea.vmem [#allocation10], %s807
          %809 = dma.done %s805, 2048
        $region72: #{tpu_custom_call.1} parent=67 // pred_fallthru
          _
      $region68: #{tpu_custom_call.1} parent=5 // pred_fallthru
        _
    $region6: #{tpu_custom_call.1} parent=1 // loop_footer
      %s26 = sadd.s32 1, %s22
    $region7: #{tpu_custom_call.1} parent=1 // loop_footer_branch
      %21 = sbr.rel target = $region3
    $region8: #{tpu_custom_call.1} parent=1 // loop_exit
      _
    %810 = vsyncpa [#allocation3], 1
    %s811 = scalar_lea.sflag [#allocation3], 1
    %812 = vsyncpa %s811, 1
    %813 = vsyncpa [#allocation6], 1
    %s814 = scalar_lea.sflag [#allocation6], 1
    %815 = vsyncpa %s814, 1
    %816 = vsyncpa [#allocation9], 1
    %817 = vsyncpa [#allocation4], 1
    %s818 = scalar_lea.sflag [#allocation4], 1
    %819 = vsyncpa %s818, 1

</llo_original>
